<compile_context>
chip_gen: v7x
topology: tpu7x:2x2x1
jax: 0.10.0
libtpu: 0.0.40
codegen_flags: <defaults>
</compile_context>

<pallas_src>
import functools

import jax
import jax.numpy as jnp
from jax.experimental import pallas as pl
from jax.experimental.pallas import tpu as pltpu

# p.EPS in the original code is an external constant; chosen deterministically here.
EPS = 1e-8
LANE = 128
SUBLANE = 8
CHUNK_ROWS = 128            # rows folded into the accumulator per inner step (16 vregs f32)
MAX_BLOCK_ROWS = 4096       # 4096x128 f32 = 2 MiB/block; x2 inputs x2 buffers = 8 MiB VMEM
NUM_CORE_SPLITS = 2         # leading "parallel" axis -> both TCs on v7x
MIN_ROWS_FOR_SPLIT = 2 * MAX_BLOCK_ROWS   # only split when each split gets >= 1 full block


def _am_loss_kernel(x_ref, s_ref, out_ref, acc_ref, *,
                    block_rows, chunk_rows, blocks_per_split, valid_rows,
                    assume_binary_segment, refine_reciprocal):
    c = pl.program_id(0)          # core-split axis ("parallel")
    i = pl.program_id(1)          # sequential reduction axis ("arbitrary")

    @pl.when(i == 0)
    def _():
        acc_ref[...] = jnp.zeros_like(acc_ref)

    # Rows this step *intends* to cover in the flattened (M, 128) slab. The
    # index_map clamps the DMA to stay in bounds; duplicated / past-the-end
    # rows are zeroed on the masked path only.
    blk = c * blocks_per_split + i
    row0 = blk * block_rows
    num_chunks = block_rows // chunk_rows

    def per_elem(x, s):
        # segment ("non-null cell") term: s * (1/(x*s + EPS) - 1)
        d = x * s + EPS
        inv = pl.reciprocal(d, approx=True)          # EUP slot (free-ish)
        if refine_reciprocal:
            inv = inv * (2.0 - d * inv)              # one NR step -> ~f32-exact
        seg_term = s * (inv - 1.0)
        # zero-cell term: BCELoss(x, s) * (1 - s), logs clamped at -100
        one_m_s = 1.0 - s
        log_1mx = jnp.maximum(jnp.log(1.0 - x), -100.0)
        if assume_binary_segment:
            # s in {0,1}: s*(1-s)=0 and (1-s)^2=(1-s)  =>  BCE*(1-s) = -(1-s)*log(1-x)
            non_seg = -one_m_s * log_1mx
        else:
            log_x = jnp.maximum(jnp.log(x), -100.0)
            non_seg = -(s * log_x + one_m_s * log_1mx) * one_m_s
        return seg_term + non_seg

    def fold(contrib):
        # (chunk_rows, 128) -> (8, 128): pure VPU adds into the accumulator.
        return contrib.reshape(chunk_rows // SUBLANE, SUBLANE, LANE).sum(axis=0)

    def accumulate(masked):
        # Statically unrolled chunk loop: static ref slices, values stay in
        # vregs, no (block_rows,128) temporary ever materializes in VMEM.
        for k in range(num_chunks):
            r0 = k * chunk_rows
            x = x_ref[pl.ds(r0, chunk_rows), :].astype(jnp.float32)
            s = s_ref[pl.ds(r0, chunk_rows), :].astype(jnp.float32)
            contrib = per_elem(x, s)
            if masked:
                rows = (jax.lax.broadcasted_iota(jnp.int32, (chunk_rows, LANE), 0)
                        + (row0 + r0))
                contrib = jnp.where(rows < valid_rows, contrib, 0.0)
            acc_ref[...] += fold(contrib)

    # Steady state: every row of this block is in range -> no masking at all.
    is_full = (row0 + block_rows) <= valid_rows

    @pl.when(is_full)
    def _():
        accumulate(masked=False)

    # Tail block and clamped-duplicate steps: zero out-of-range rows.
    @pl.when(jnp.logical_not(is_full))
    def _():
        accumulate(masked=True)

    @pl.when(i == pl.num_programs(1) - 1)
    def _():
        out_ref[0, 0] = jnp.sum(acc_ref[...])


def am_loss(model_output, segment, *, assume_binary_segment=False,
            refine_reciprocal=True):
    """Scalar AM loss. model_output, segment: same shape (e.g. NCHW)."""
    assert model_output.shape == segment.shape
    # Keep the original dtype (e.g. bf16) — the kernel upcasts per-chunk.
    x = model_output.reshape(-1)
    s = segment.reshape(-1)
    n = x.shape[0]

    # Lane-align so the flat vector reshapes (copy-free) to (M, 128). Zero
    # pads contribute exactly 0 to both loss terms.
    rem = n % LANE
    if rem:
        pad = LANE - rem
        x = jnp.pad(x, (0, pad))
        s = jnp.pad(s, (0, pad))
    x = x.reshape(-1, LANE)
    s = s.reshape(-1, LANE)
    M = x.shape[0]

    # Only use the core-split axis when each split gets >= 1 full block;
    # small inputs run one sequential stream (no duplicate-block DMA, no
    # extra masked step, single accumulator init/finalize).
    num_splits = NUM_CORE_SPLITS if M >= MIN_ROWS_FOR_SPLIT else 1
    rows_per_split = pl.cdiv(M, num_splits)
    if rows_per_split >= CHUNK_ROWS:
        chunk_rows = CHUNK_ROWS
        block_rows = min(MAX_BLOCK_ROWS,
                         pl.cdiv(rows_per_split, CHUNK_ROWS) * CHUNK_ROWS)
    else:
        block_rows = pl.cdiv(rows_per_split, SUBLANE) * SUBLANE
        chunk_rows = block_rows
    num_blocks = pl.cdiv(M, block_rows)
    blocks_per_split = pl.cdiv(num_blocks, num_splits)

    def in_map(c, i):
        # Clamp so the DMA never addresses past the last block; the kernel's
        # masked path zeroes any duplicated / out-of-range rows.
        return (jnp.minimum(c * blocks_per_split + i, num_blocks - 1), 0)

    kernel = functools.partial(
        _am_loss_kernel,
        block_rows=block_rows,
        chunk_rows=chunk_rows,
        blocks_per_split=blocks_per_split,
        valid_rows=M,
        assume_binary_segment=assume_binary_segment,
        refine_reciprocal=refine_reciprocal,
    )

    partials = pl.pallas_call(
        kernel,
        out_shape=jax.ShapeDtypeStruct((num_splits, 1), jnp.float32),
        grid_spec=pltpu.PrefetchScalarGridSpec(
            num_scalar_prefetch=0,
            grid=(num_splits, blocks_per_split),
            in_specs=[
                pl.BlockSpec((block_rows, LANE), in_map),
                pl.BlockSpec((block_rows, LANE), in_map),
            ],
            out_specs=pl.BlockSpec(
                (1, 1), lambda c, i: (c, 0), memory_space=pltpu.SMEM
            ),
            scratch_shapes=[pltpu.VMEM((SUBLANE, LANE), jnp.float32)],
        ),
        compiler_params=pltpu.CompilerParams(
            # TODO(synk): on v7x, if xprof shows only one TensorCore busy,
            # switch to (pltpu.CORE_PARALLEL, pltpu.ARBITRARY); kept as
            # "parallel" here since it compiles/runs cleanly on all gens.
            dimension_semantics=("parallel", "arbitrary")
        ),
    )(x, s)
    # One partial per core split; summing a couple of scalars in the wrapper is free.
    return jnp.sum(partials)


def _reference(model_output, segment):
    x = model_output.astype(jnp.float32)
    s = segment.astype(jnp.float32)
    ones = x * s
    seg_loss = jnp.sum(s * (1.0 / (ones + EPS) - 1.0))
    log_x = jnp.maximum(jnp.log(x), -100.0)
    log_1mx = jnp.maximum(jnp.log(1.0 - x), -100.0)
    bce = -(s * log_x + (1.0 - s) * log_1mx)
    return seg_loss + jnp.sum(bce * (1.0 - s))


if __name__ == "__main__":
    key = jax.random.PRNGKey(0)
    k1, k2 = jax.random.split(key)

    B, C, H, W = 2, 4, 16, 16  # NCHW, as the PyTorch model would consume
    # model_output is a probability map (BCELoss requires values in (0, 1))
    model_output = jax.random.uniform(
        k1, (B, C, H, W), dtype=jnp.float32, minval=1e-4, maxval=1.0 - 1e-4
    )
    # segment is a binary mask
    segment = (jax.random.uniform(k2, (B, C, H, W)) > 0.7).astype(jnp.float32)

    ref = _reference(model_output, segment)

    # Binary-mask fast path (the segmentation use-case) ...
    loss_bin = jax.block_until_ready(
        am_loss(model_output, segment, assume_binary_segment=True))
    # ... and the fully general BCE path.
    loss_gen = jax.block_until_ready(
        am_loss(model_output, segment, assume_binary_segment=False))

    for loss in (loss_bin, loss_gen):
        rel_err = jnp.abs(loss - ref) / jnp.maximum(jnp.abs(ref), 1.0)
        assert rel_err < 1e-3, (loss, ref, rel_err)

    print("KERNEL_OK")
</pallas_src>

<mosaic_0001>
module attributes {stable_mosaic.version = 11 : i64} {
  func.func @_am_loss_kernel(%arg0: i32, %arg1: i32, %arg2: memref<16x128xf32, #tpu.memory_space<vmem>>, %arg3: memref<16x128xf32, #tpu.memory_space<vmem>>, %arg4: memref<1x1xf32, #tpu.memory_space<smem>>, %arg5: memref<8x128xf32, #tpu.memory_space<vmem>>) attributes {dimension_semantics = [#tpu.dimension_semantics<parallel>, #tpu.dimension_semantics<arbitrary>], iteration_bounds = array<i64: 1, 1>, scalar_prefetch = 0 : i64, scratch_operands = 1 : i64, tpu.core_type = #tpu.core_type<tc>, window_params = [{transform_indices = @transform_0, window_bounds = array<i64: 16, 128>}, {transform_indices = @transform_1, window_bounds = array<i64: 16, 128>}, {transform_indices = @transform_2, window_bounds = array<i64: 1, 1>}]} {
    %c0_i32 = arith.constant 0 : i32
    %0 = arith.cmpi eq, %arg1, %c0_i32 : i32
    %1 = arith.extui %0 : i1 to i32
    %c0_i32_0 = arith.constant 0 : i32
    %2 = arith.cmpi ne, %1, %c0_i32_0 : i32
    scf.if %2 {
      %cst = arith.constant 0.000000e+00 : f32
      %16 = vector.broadcast %cst : f32 to vector<8x128xf32>
      %c0 = arith.constant 0 : index
      %c0_7 = arith.constant 0 : index
      %17 = vector.load %arg5[%c0, %c0_7] : memref<8x128xf32, #tpu.memory_space<vmem>>, vector<8x128xf32>
      tpu.vector_store %arg5[%c0, %c0_7], %16 {strides = array<i32>} : memref<8x128xf32, #tpu.memory_space<vmem>>, vector<8x128xf32>,
    } else {
    }
    %c1_i32 = arith.constant 1 : i32
    %3 = arith.muli %arg0, %c1_i32 : i32
    %4 = arith.addi %3, %arg1 : i32
    %c16_i32 = arith.constant 16 : i32
    %5 = arith.muli %4, %c16_i32 : i32
    %c16_i32_1 = arith.constant 16 : i32
    %6 = arith.addi %5, %c16_i32_1 : i32
    %c16_i32_2 = arith.constant 16 : i32
    %7 = arith.cmpi sle, %6, %c16_i32_2 : i32
    %8 = arith.extui %7 : i1 to i32
    %c0_i32_3 = arith.constant 0 : i32
    %9 = arith.cmpi ne, %8, %c0_i32_3 : i32
    scf.if %9 {
      %c0 = arith.constant 0 : index
      %c0_7 = arith.constant 0 : index
      %16 = vector.load %arg2[%c0, %c0_7] : memref<16x128xf32, #tpu.memory_space<vmem>>, vector<16x128xf32>
      %c0_8 = arith.constant 0 : index
      %c0_9 = arith.constant 0 : index
      %17 = vector.load %arg3[%c0_8, %c0_9] : memref<16x128xf32, #tpu.memory_space<vmem>>, vector<16x128xf32>
      %18 = arith.mulf %16, %17 : vector<16x128xf32>
      %cst = arith.constant 9.99999993E-9 : f32
      %19 = vector.broadcast %cst : f32 to vector<16x128xf32>
      %20 = arith.addf %18, %19 : vector<16x128xf32>
      %21 = tpu.reciprocal %20 {approx = true} : vector<16x128xf32> -> vector<16x128xf32>
      %22 = arith.mulf %20, %21 : vector<16x128xf32>
      %cst_10 = arith.constant 2.000000e+00 : f32
      %23 = vector.broadcast %cst_10 : f32 to vector<16x128xf32>
      %24 = arith.subf %23, %22 : vector<16x128xf32>
      %25 = arith.mulf %21, %24 : vector<16x128xf32>
      %cst_11 = arith.constant 1.000000e+00 : f32
      %26 = vector.broadcast %cst_11 : f32 to vector<16x128xf32>
      %27 = arith.subf %25, %26 : vector<16x128xf32>
      %28 = arith.mulf %17, %27 : vector<16x128xf32>
      %cst_12 = arith.constant 1.000000e+00 : f32
      %29 = vector.broadcast %cst_12 : f32 to vector<16x128xf32>
      %30 = arith.subf %29, %17 : vector<16x128xf32>
      %cst_13 = arith.constant 1.000000e+00 : f32
      %31 = vector.broadcast %cst_13 : f32 to vector<16x128xf32>
      %32 = arith.subf %31, %16 : vector<16x128xf32>
      %33 = math.log %32 : vector<16x128xf32>
      %cst_14 = arith.constant -1.000000e+02 : f32
      %34 = vector.broadcast %cst_14 : f32 to vector<16x128xf32>
      %35 = arith.maximumf %33, %34 : vector<16x128xf32>
      %cst_15 = arith.constant 0.000000e+00 : f32
      %36 = vector.broadcast %cst_15 : f32 to vector<16x128xf32>
      %37 = arith.subf %36, %30 : vector<16x128xf32>
      %38 = arith.mulf %37, %35 : vector<16x128xf32>
      %39 = arith.addf %28, %38 : vector<16x128xf32>
      %c0_16 = arith.constant 0 : index
      %c0_17 = arith.constant 0 : index
      %40 = vector.load %arg5[%c0_16, %c0_17] : memref<8x128xf32, #tpu.memory_space<vmem>>, vector<8x128xf32>
      %41 = vector.shape_cast %39 : vector<16x128xf32> to vector<2x8x128xf32>
      %cst_18 = arith.constant dense<0.000000e+00> : vector<8x128xf32>
      %42 = vector.multi_reduction <add>, %41, %cst_18 [0] : vector<2x8x128xf32> to vector<8x128xf32>
      %43 = arith.addf %40, %42 : vector<8x128xf32>
      %c0_19 = arith.constant 0 : index
      %c0_20 = arith.constant 0 : index
      %44 = vector.load %arg5[%c0_19, %c0_20] : memref<8x128xf32, #tpu.memory_space<vmem>>, vector<8x128xf32>
      tpu.vector_store %arg5[%c0_19, %c0_20], %43 {strides = array<i32>} : memref<8x128xf32, #tpu.memory_space<vmem>>, vector<8x128xf32>,
    } else {
    }
    %true = arith.constant true
    %10 = arith.xori %7, %true : i1
    %11 = arith.extui %10 : i1 to i32
    %c0_i32_4 = arith.constant 0 : i32
    %12 = arith.cmpi ne, %11, %c0_i32_4 : i32
    scf.if %12 {
      %c0 = arith.constant 0 : index
      %c0_7 = arith.constant 0 : index
      %16 = vector.load %arg2[%c0, %c0_7] : memref<16x128xf32, #tpu.memory_space<vmem>>, vector<16x128xf32>
      %c0_8 = arith.constant 0 : index
      %c0_9 = arith.constant 0 : index
      %17 = vector.load %arg3[%c0_8, %c0_9] : memref<16x128xf32, #tpu.memory_space<vmem>>, vector<16x128xf32>
      %18 = arith.mulf %16, %17 : vector<16x128xf32>
      %cst = arith.constant 9.99999993E-9 : f32
      %19 = vector.broadcast %cst : f32 to vector<16x128xf32>
      %20 = arith.addf %18, %19 : vector<16x128xf32>
      %21 = tpu.reciprocal %20 {approx = true} : vector<16x128xf32> -> vector<16x128xf32>
      %22 = arith.mulf %20, %21 : vector<16x128xf32>
      %cst_10 = arith.constant 2.000000e+00 : f32
      %23 = vector.broadcast %cst_10 : f32 to vector<16x128xf32>
      %24 = arith.subf %23, %22 : vector<16x128xf32>
      %25 = arith.mulf %21, %24 : vector<16x128xf32>
      %cst_11 = arith.constant 1.000000e+00 : f32
      %26 = vector.broadcast %cst_11 : f32 to vector<16x128xf32>
      %27 = arith.subf %25, %26 : vector<16x128xf32>
      %28 = arith.mulf %17, %27 : vector<16x128xf32>
      %cst_12 = arith.constant 1.000000e+00 : f32
      %29 = vector.broadcast %cst_12 : f32 to vector<16x128xf32>
      %30 = arith.subf %29, %17 : vector<16x128xf32>
      %cst_13 = arith.constant 1.000000e+00 : f32
      %31 = vector.broadcast %cst_13 : f32 to vector<16x128xf32>
      %32 = arith.subf %31, %16 : vector<16x128xf32>
      %33 = math.log %32 : vector<16x128xf32>
      %cst_14 = arith.constant -1.000000e+02 : f32
      %34 = vector.broadcast %cst_14 : f32 to vector<16x128xf32>
      %35 = arith.maximumf %33, %34 : vector<16x128xf32>
      %cst_15 = arith.constant 0.000000e+00 : f32
      %36 = vector.broadcast %cst_15 : f32 to vector<16x128xf32>
      %37 = arith.subf %36, %30 : vector<16x128xf32>
      %38 = arith.mulf %37, %35 : vector<16x128xf32>
      %39 = arith.addf %28, %38 : vector<16x128xf32>
      %40 = tpu.iota {dimensions = array<i32: 0>} : vector<16x128xi32>
      %c0_i32_16 = arith.constant 0 : i32
      %41 = arith.addi %5, %c0_i32_16 : i32
      %42 = vector.broadcast %41 : i32 to vector<16x128xi32>
      %43 = arith.addi %40, %42 : vector<16x128xi32>
      %c16_i32_17 = arith.constant 16 : i32
      %44 = vector.broadcast %c16_i32_17 : i32 to vector<16x128xi32>
      %45 = arith.cmpi slt, %43, %44 : vector<16x128xi32>
      %cst_18 = arith.constant 0.000000e+00 : f32
      %46 = vector.broadcast %cst_18 : f32 to vector<16x128xf32>
      %47 = arith.select %45, %39, %46 : vector<16x128xi1>, vector<16x128xf32>
      %c0_19 = arith.constant 0 : index
      %c0_20 = arith.constant 0 : index
      %48 = vector.load %arg5[%c0_19, %c0_20] : memref<8x128xf32, #tpu.memory_space<vmem>>, vector<8x128xf32>
      %49 = vector.shape_cast %47 : vector<16x128xf32> to vector<2x8x128xf32>
      %cst_21 = arith.constant dense<0.000000e+00> : vector<8x128xf32>
      %50 = vector.multi_reduction <add>, %49, %cst_21 [0] : vector<2x8x128xf32> to vector<8x128xf32>
      %51 = arith.addf %48, %50 : vector<8x128xf32>
      %c0_22 = arith.constant 0 : index
      %c0_23 = arith.constant 0 : index
      %52 = vector.load %arg5[%c0_22, %c0_23] : memref<8x128xf32, #tpu.memory_space<vmem>>, vector<8x128xf32>
      tpu.vector_store %arg5[%c0_22, %c0_23], %51 {strides = array<i32>} : memref<8x128xf32, #tpu.memory_space<vmem>>, vector<8x128xf32>,
    } else {
    }
    %c0_i32_5 = arith.constant 0 : i32
    %13 = arith.cmpi eq, %arg1, %c0_i32_5 : i32
    %14 = arith.extui %13 : i1 to i32
    %c0_i32_6 = arith.constant 0 : i32
    %15 = arith.cmpi ne, %14, %c0_i32_6 : i32
    scf.if %15 {
      %c0 = arith.constant 0 : index
      %c0_7 = arith.constant 0 : index
      %16 = vector.load %arg5[%c0, %c0_7] : memref<8x128xf32, #tpu.memory_space<vmem>>, vector<8x128xf32>
      %17 = vector.shape_cast %16 : vector<8x128xf32> to vector<1x8x128xf32>
      %cst = arith.constant dense<0.000000e+00> : vector<1xf32>
      %18 = vector.multi_reduction <add>, %17, %cst [1, 2] : vector<1x8x128xf32> to vector<1xf32>
      %19 = vector.shape_cast %18 : vector<1xf32> to vector<1x1x1xf32>
      %20 = vector.extract %19[0, 0, 0] : f32 from vector<1x1x1xf32>
      %c0_8 = arith.constant 0 : index
      %c0_9 = arith.constant 0 : index
      %21 = memref.load %arg4[%c0_8, %c0_9] : memref<1x1xf32, #tpu.memory_space<smem>>
      memref.store %20, %arg4[%c0_8, %c0_9] : memref<1x1xf32, #tpu.memory_space<smem>>
    } else {
    }
    return
  }
  func.func @transform_0(%arg0: i32, %arg1: i32) -> (i32, i32) {
    %c1_i32 = arith.constant 1 : i32
    %0 = arith.muli %arg0, %c1_i32 : i32
    %1 = arith.addi %0, %arg1 : i32
    %c0_i32 = arith.constant 0 : i32
    %2 = arith.minsi %1, %c0_i32 : i32
    %c0_i32_0 = arith.constant 0 : i32
    %c0_i32_1 = arith.constant 0 : i32
    return %2, %c0_i32_0 : i32, i32
  }
  func.func @transform_1(%arg0: i32, %arg1: i32) -> (i32, i32) {
    %c1_i32 = arith.constant 1 : i32
    %0 = arith.muli %arg0, %c1_i32 : i32
    %1 = arith.addi %0, %arg1 : i32
    %c0_i32 = arith.constant 0 : i32
    %2 = arith.minsi %1, %c0_i32 : i32
    %c0_i32_0 = arith.constant 0 : i32
    %c0_i32_1 = arith.constant 0 : i32
    return %2, %c0_i32_0 : i32, i32
  }
  func.func @transform_2(%arg0: i32, %arg1: i32) -> (i32, i32) {
    %c0_i32 = arith.constant 0 : i32
    %c0_i32_0 = arith.constant 0 : i32
    return %arg0, %c0_i32 : i32, i32
  }
}

</mosaic_0001>

<llo_original>
// kernel: tpu_custom_call.1
$region0: #{tpu_custom_call.1}
  #allocation0 [shape = 'u32[]', space=smem, size = 0x4, offset = 0x4, fixed_abs, tag = 'smem constant byte address 0x4 - core index']
  #allocation1 [shape = 'u32[144,128]{1,0:T(1,128)}', space=vmem, size = 0x12000, scoped, tag = 'internal scratch']
  #allocation2 [shape = 'f32[8,128]{1,0:T(8,128)}', space=vmem, size = 0x1000, scoped, tag = 'scratch operand']
  %s0 = inlined_call_operand.hbm [shape: f32[16,128], index: 0, kind: input, shape index: {}]
  %s1 = inlined_call_operand.hbm [shape: f32[16,128], index: 1, kind: input, shape index: {}]
  %s2 = inlined_call_operand.hbm [shape: f32[1,1], index: 2, kind: output, shape index: {}]
  %s3 = sld [smem:[#allocation0]]
  $region42: #{tpu_custom_call.1} parent=0
    _
  %s5 = ssub.s32 1, %s3
  %s6 = scalar_select 0, %s5, %s3
  $region1: #{tpu_custom_call.1} parent=0
    #allocation3 [shape = 'u8[8192]{0}', space=vmem, size = 0x2000, scoped, tag = 'input window, operand 0, single buffered']
    #allocation4 [shape = 's32[1]{0}', space=sflag, size = 0x4, scoped, tag = 'scoped memory for tpu_custom_call.1']
    #allocation5 [shape = 's32[1]{0}', space=sflag, size = 0x4, scoped, tag = 'scoped memory for tpu_custom_call.1']
    #allocation6 [shape = 'u8[8192]{0}', space=vmem, size = 0x2000, scoped, tag = 'input window, operand 1, single buffered']
    #allocation7 [shape = 's32[1]{0}', space=sflag, size = 0x4, scoped, tag = 'scoped memory for tpu_custom_call.1']
    #allocation8 [shape = 'u8[512]{0}', space=smem, size = 0x200, scoped, tag = 'output window, operand 0, single buffered']
    %7 = vsyncpa [#allocation4], 0
    %8 = vsyncpa [#allocation7], 0
    %9 = vsyncpa [#allocation5], 0
    // Predicated region
    $region2: #{tpu_custom_call.1} parent=1 // pred_check
      _
    $region3: #{tpu_custom_call.1} parent=1 // pred_check_branch
      %11 = sbr.rel (0) target = $region5
    $region4: #{tpu_custom_call.1} parent=1 // pred_region
      %s12 = sadd.s32 0, 0
      %p13 = scmp.lt.s32.totalorder %s12, 0
      %s14 = scalar_select %p13, %s12, 0
      %s15 = smul.u32 2, %s14
      %s17 = ssub.s32 256, 256
      %18 = vsyncadd [#allocation4], %s17
      %s19 = smul.addr %s15, 128
      %s20 = scalar_lea.hbm %s0, %s19
      %s21 = sshll.u32 [#allocation3], 4
      %s22 = int_to_ptr.vmem [resolvable:$true] %s21
      %27 = dma.hbm_to_vmem [thread:$0]  %s20, 256, %s22, [#allocation4], 128, 128, 8
    $region5: #{tpu_custom_call.1} parent=1 // pred_fallthru
      _
    // Predicated region
    $region6: #{tpu_custom_call.1} parent=1 // pred_check
      _
    $region7: #{tpu_custom_call.1} parent=1 // pred_check_branch
      %29 = sbr.rel (0) target = $region9
    $region8: #{tpu_custom_call.1} parent=1 // pred_region
      %s30 = sadd.s32 0, 0
      %p31 = scmp.lt.s32.totalorder %s30, 0
      %s32 = scalar_select %p31, %s30, 0
      %s33 = smul.u32 2, %s32
      %s35 = ssub.s32 256, 256
      %36 = vsyncadd [#allocation7], %s35
      %s37 = smul.addr %s33, 128
      %s38 = scalar_lea.hbm %s1, %s37
      %s39 = sshll.u32 [#allocation6], 4
      %s40 = int_to_ptr.vmem [resolvable:$true] %s39
      %45 = dma.hbm_to_vmem [thread:$0]  %s38, 256, %s40, [#allocation7], 128, 128, 8
    $region9: #{tpu_custom_call.1} parent=1 // pred_fallthru
      _
    // Predicated region
    $region10: #{tpu_custom_call.1} parent=1 // pred_check
      _
    $region11: #{tpu_custom_call.1} parent=1 // pred_check_branch
      %47 = sbr.rel (0) target = $region13
    $region12: #{tpu_custom_call.1} parent=1 // pred_region
      %48 = dma.done [#allocation4], 256
    $region13: #{tpu_custom_call.1} parent=1 // pred_fallthru
      _
    // Predicated region
    $region14: #{tpu_custom_call.1} parent=1 // pred_check
      _
    $region15: #{tpu_custom_call.1} parent=1 // pred_check_branch
      %50 = sbr.rel (0) target = $region17
    $region16: #{tpu_custom_call.1} parent=1 // pred_region
      %51 = dma.done [#allocation7], 256
    $region17: #{tpu_custom_call.1} parent=1 // pred_fallthru
      _
    %s52 = sadd.s32 0, 0
    %p53 = scmp.lt.s32.totalorder %s52, 0
    %s54 = scalar_select %p53, %s52, 0
    %s55 = smul.u32 2, %s54
    %s56 = sadd.s32 0, 0
    %p57 = scmp.lt.s32.totalorder %s56, 0
    %s58 = scalar_select %p57, %s56, 0
    %s59 = smul.u32 2, %s58
    %p60 = scmp.eq.s32.totalorder 0, 0
    // Predicated region
    $region18: #{tpu_custom_call.1} parent=1 // pred_check
      %p61 = pneg %p60
    $region19: #{tpu_custom_call.1} parent=1 // pred_check_branch
      %63 = sbr.rel (%p61) target = $region21
    $region20: #{tpu_custom_call.1} parent=1 // pred_region
      %64 = vst [vmem:[#allocation2] sm:$0xff] 0.0
    $region21: #{tpu_custom_call.1} parent=1 // pred_fallthru
      _
    %s65 = sadd.s32 0, 0
    %s66 = smul.u32 %s65, 16
    %s67 = sadd.s32 %s66, 16
    %p68 = scmp.le.s32.totalorder %s67, 16
    // Predicated region
    $region22: #{tpu_custom_call.1} parent=1 // pred_check
      %p69 = pneg %p68
    $region23: #{tpu_custom_call.1} parent=1 // pred_check_branch
      %71 = sbr.rel (%p69) target = $region25
    $region24: #{tpu_custom_call.1} parent=1 // pred_region
      %v72 = vld [vmem:[#allocation3] sm:$0xff]
      %v73 = vld [vmem:[#allocation3 + $0x8] sm:$0xff]
      %v74 = vld [vmem:[#allocation6] sm:$0xff]
      %v75 = vld [vmem:[#allocation6 + $0x8] sm:$0xff]
      %v76 = vmul.f32 %v72, %v74
      %v77 = vmul.f32 %v73, %v75
      %v78 = vadd.f32 %v76, 1e-08
      %v79 = vadd.f32 %v77, 1e-08
      %v80 = vrcp.pop %v78
      %v81 = vrcp.pop %v79
      %v82 = vmul.f32 %v78, %v80
      %v83 = vmul.f32 %v79, %v81
      %v84 = vsub.f32 2.0, %v82
      %v85 = vsub.f32 2.0, %v83
      %v86 = vmul.f32 %v80, %v84
      %v87 = vmul.f32 %v81, %v85
      %v88 = vsub.f32 %v86, 1.0
      %v89 = vsub.f32 %v87, 1.0
      %v90 = vmul.f32 %v74, %v88
      %v91 = vmul.f32 %v75, %v89
      %v92 = vsub.f32 1.0, %v74
      %v93 = vsub.f32 1.0, %v75
      %v94 = vsub.f32 1.0, %v72
      %v95 = vsub.f32 1.0, %v73
      %v96 = vlog2.pop %v94
      %v97 = vmul.f32 %v96, 0.6931472
      %v98 = vlog2.pop %v95
      %v99 = vmul.f32 %v98, 0.6931472
      %v100 = vmax.f32 %v97, -100.0
      %v101 = vmax.f32 %v99, -100.0
      %v102 = vsub.f32 0.0, %v92
      %v103 = vsub.f32 0.0, %v93
      %v104 = vmul.f32 %v102, %v100
      %v105 = vmul.f32 %v103, %v101
      %v106 = vadd.f32 %v90, %v104
      %v107 = vadd.f32 %v91, %v105
      %v108 = vld [vmem:[#allocation2] sm:$0xff]
      %v109 = vadd.f32 %v106, %v107
      %v110 = vadd.f32 %v108, %v109
      %111 = vst [vmem:[#allocation2] sm:$0xff] %v110
    $region25: #{tpu_custom_call.1} parent=1 // pred_fallthru
      _
    %p112 = scmp.gt.s32.totalorder %s67, 16
    // Predicated region
    $region26: #{tpu_custom_call.1} parent=1 // pred_check
      %p113 = pneg %p112
    $region27: #{tpu_custom_call.1} parent=1 // pred_check_branch
      %115 = sbr.rel (%p113) target = $region29
    $region28: #{tpu_custom_call.1} parent=1 // pred_region
      %v116 = vld [vmem:[#allocation3] sm:$0xff]
      %v117 = vld [vmem:[#allocation3 + $0x8] sm:$0xff]
      %v118 = vld [vmem:[#allocation6] sm:$0xff]
      %v119 = vld [vmem:[#allocation6 + $0x8] sm:$0xff]
      %v120 = vmul.f32 %v116, %v118
      %v121 = vmul.f32 %v117, %v119
      %v122 = vadd.f32 %v120, 1e-08
      %v123 = vadd.f32 %v121, 1e-08
      %v124 = vrcp.pop %v122
      %v125 = vrcp.pop %v123
      %v126 = vmul.f32 %v122, %v124
      %v127 = vmul.f32 %v123, %v125
      %v128 = vsub.f32 2.0, %v126
      %v129 = vsub.f32 2.0, %v127
      %v130 = vmul.f32 %v124, %v128
      %v131 = vmul.f32 %v125, %v129
      %v132 = vsub.f32 %v130, 1.0
      %v133 = vsub.f32 %v131, 1.0
      %v134 = vmul.f32 %v118, %v132
      %v135 = vmul.f32 %v119, %v133
      %v136 = vsub.f32 1.0, %v118
      %v137 = vsub.f32 1.0, %v119
      %v138 = vsub.f32 1.0, %v116
      %v139 = vsub.f32 1.0, %v117
      %v140 = vlog2.pop %v138
      %v141 = vmul.f32 %v140, 0.6931472
      %v142 = vlog2.pop %v139
      %v143 = vmul.f32 %v142, 0.6931472
      %v144 = vmax.f32 %v141, -100.0
      %v145 = vmax.f32 %v143, -100.0
      %v146 = vsub.f32 0.0, %v136
      %v147 = vsub.f32 0.0, %v137
      %v148 = vmul.f32 %v146, %v144
      %v149 = vmul.f32 %v147, %v145
      %v150 = vadd.f32 %v134, %v148
      %v151 = vadd.f32 %v135, %v149
      %v152 = vlaneseq
      %v153 = vshrl.u32 %v152, 7
      %v154 = vadd.s32 %v153, 8
      %v155 = vstv %s66
      %v156 = vadd.s32 %v153, %v155
      %v157 = vadd.s32 %v154, %v155
      %vm158 = vcmp.lt.s32.totalorder %v156, 16
      %vm159 = vcmp.lt.s32.totalorder %v157, 16
      %v160 = vsel %vm158, %v150, 0.0
      %v161 = vsel %vm159, %v151, 0.0
      %v162 = vld [vmem:[#allocation2] sm:$0xff]
      %v163 = vadd.f32 %v160, %v161
      %v164 = vadd.f32 %v162, %v163
      %165 = vst [vmem:[#allocation2] sm:$0xff] %v164
    $region29: #{tpu_custom_call.1} parent=1 // pred_fallthru
      _
    // Predicated region
    $region30: #{tpu_custom_call.1} parent=1 // pred_check
      %p166 = pneg %p60
    $region31: #{tpu_custom_call.1} parent=1 // pred_check_branch
      %168 = sbr.rel (%p166) target = $region33
    $region32: #{tpu_custom_call.1} parent=1 // pred_region
      %v169 = vld [vmem:[#allocation2] sm:$0xff]
      %170 = vadd.xlane.f32.xlu0 %v169
      %v171 = vpop.xlane.xlu0 %170
      %v172 = vrot.slane %v171, 4
      %v173 = vadd.f32 %v171, %v172
      %v174 = vrot.slane %v173, 2
      %v175 = vadd.f32 %v173, %v174
      %v176 = vrot.slane %v175, 1
      %v177 = vadd.f32 %v175, %v176
      %s178 = vtos %v177
      %s179 = scalar_lea.smem [#allocation8], 0
      %180 = sst [smem:[%s179]] %s178
    $region33: #{tpu_custom_call.1} parent=1 // pred_fallthru
      _
    // Predicated region
    $region34: #{tpu_custom_call.1} parent=1 // pred_check
      _
    $region35: #{tpu_custom_call.1} parent=1 // pred_check_branch
      %182 = sbr.rel (0) target = $region37
    $region36: #{tpu_custom_call.1} parent=1 // pred_region
      %s184 = ssub.s32 16, 16
      %185 = vsyncadd [#allocation5], %s184
      %188 = dma.smem_to_hbm [#allocation8], 16, %s2, [#allocation5]
    $region37: #{tpu_custom_call.1} parent=1 // pred_fallthru
      _
    // Predicated region
    $region38: #{tpu_custom_call.1} parent=1 // pred_check
      _
    $region39: #{tpu_custom_call.1} parent=1 // pred_check_branch
      %190 = sbr.rel (0) target = $region41
    $region40: #{tpu_custom_call.1} parent=1 // pred_region
      %191 = dma.done [#allocation5], 16
    $region41: #{tpu_custom_call.1} parent=1 // pred_fallthru
      _
    %192 = sfence
    %193 = vsyncpa [#allocation4], 1
    %194 = vsyncpa [#allocation7], 1
    %195 = vsyncpa [#allocation5], 1

</llo_original>
